<compile_context>
chip_gen: v7x
topology: tpu7x:2x2x1
jax: 0.10.0
libtpu: 0.0.40
codegen_flags: <defaults>
</compile_context>

<pallas_src>
import functools

import jax
import jax.numpy as jnp
from jax.experimental import pallas as pl
from jax.experimental.pallas import tpu as pltpu


K_IN, H, N_OUT = 25, 128, 44        # logical layer sizes of the PyTorch module
K_PAD, N_PAD = 32, 128              # sublane-aligned contraction dim / lane-dense output


def dqn_kernel(x_ref,
               w1_ref,
               w2_ref, b2_ref,
               w3_ref, b3_ref,
               w4_ref, b4_ref,
               o_ref):
    # Layer 1: Linear(25->128) + ReLU.  Bias is folded into row 25 of w1
    # (the wrapper sets x[:, 25] = 1.0).  Dropout -> identity at eval.
    h = jnp.dot(x_ref[...], w1_ref[...], preferred_element_type=jnp.float32)
    h = jnp.maximum(h, 0.0).astype(jnp.bfloat16)
    # Layer 2: Linear(128->128) + ReLU  (Dropout -> identity at eval)
    h = jnp.dot(h, w2_ref[...], preferred_element_type=jnp.float32)
    h = jnp.maximum(h.astype(jnp.bfloat16) + b2_ref[...], 0.0)
    # Layer 3: Linear(128->128) + ReLU
    h = jnp.dot(h, w3_ref[...], preferred_element_type=jnp.float32)
    h = jnp.maximum(h.astype(jnp.bfloat16) + b3_ref[...], 0.0)
    # Layer 4: Linear(128->44), zero-padded to 128 output lanes (unmasked bf16 store)
    out = jnp.dot(h, w4_ref[...], preferred_element_type=jnp.float32)
    o_ref[...] = (out + b4_ref[...]).astype(o_ref.dtype)


def _round_up(n, m):
    return (n + m - 1) // m * m


def _choose_tiles(B, tb_target):
    """Pick grid-step count first, then the batch tile, so padding stays ~16 rows/step."""
    b_min = _round_up(max(B, 16), 16)          # bf16 sublane packing (16 rows / packed tile)
    n_steps = pl.cdiv(b_min, tb_target)
    # Give v7x's two TCs and the auto-pipeline something to work with on mid/large
    # batches even when a single tile would fit.
    if n_steps == 1 and B >= 64:
        n_steps = 2
    # Even step count splits evenly across the two v7x TensorCores.
    if n_steps > 1 and n_steps % 2 == 1:
        n_steps += 1
    tb = _round_up(pl.cdiv(b_min, n_steps), 16)
    b_pad = tb * n_steps
    return tb, b_pad, n_steps


def pack_params(params):
    """f32 [in,out] weights / [1,out] biases -> bf16, padded, kernel-ready params."""
    (w1, b1), (w2, b2), (w3, b3), (w4, b4) = params
    # Layer 1: pad contraction 25 -> 32 and fold the bias into row 25.
    w1p = jnp.zeros((K_PAD, H), jnp.float32)
    w1p = w1p.at[:K_IN, :].set(w1)
    w1p = w1p.at[K_IN, :].set(b1.reshape(-1))
    w1p = w1p.astype(jnp.bfloat16)
    # Layer 4: pad output 44 -> 128 lanes (unmasked, lane-dense store).
    w4p = jnp.zeros((H, N_PAD), jnp.float32).at[:, :N_OUT].set(w4).astype(jnp.bfloat16)
    b4p = (jnp.zeros((1, N_PAD), jnp.float32)
           .at[:, :N_OUT].set(b4.reshape(1, -1)).astype(jnp.bfloat16))
    return (
        w1p,
        (w2.astype(jnp.bfloat16), b2.astype(jnp.bfloat16)),
        (w3.astype(jnp.bfloat16), b3.astype(jnp.bfloat16)),
        (w4p, b4p),
    )


@functools.partial(jax.jit, static_argnames=("tb_target",))
def dqn_forward(x, packed_params, *, tb_target=256):
    """x: [B, 25] float32 -> [B, 44] float32. Batch-tiled fused MLP kernel."""
    B = x.shape[0]
    w1, (w2, b2), (w3, b3), (w4, b4) = packed_params

    tb, b_pad, n_steps = _choose_tiles(B, tb_target)
    grid = (n_steps,)

    # Pad batch rows, pad the 25-wide feature dim to 32, and put a 1.0 in column 25
    # so the folded layer-1 bias is picked up by the contraction.
    xp = jnp.zeros((b_pad, K_PAD), jnp.bfloat16)
    xp = xp.at[:B, :K_IN].set(x.astype(jnp.bfloat16))
    xp = xp.at[:B, K_IN].set(1.0)

    def const_spec(shape):
        # Weights/biases stay VMEM-resident across all grid steps.
        return pl.BlockSpec(shape, lambda i: (0,) * len(shape))

    flops = 2 * b_pad * (K_PAD * H + H * H + H * H + H * N_PAD)
    bytes_accessed = (
        xp.size * 2 + b_pad * N_PAD * 2                       # bf16 in / bf16 out
        + (w1.size + w2.size + w3.size + w4.size) * 2
        + (b2.size + b3.size + b4.size) * 2
    )

    out = pl.pallas_call(
        dqn_kernel,
        out_shape=jax.ShapeDtypeStruct((b_pad, N_PAD), jnp.bfloat16),
        grid=grid,
        in_specs=[
            pl.BlockSpec((tb, K_PAD), lambda i: (i, 0)),
            const_spec(w1.shape),
            const_spec(w2.shape), const_spec(b2.shape),
            const_spec(w3.shape), const_spec(b3.shape),
            const_spec(w4.shape), const_spec(b4.shape),
        ],
        out_specs=pl.BlockSpec((tb, N_PAD), lambda i: (i, 0)),
        compiler_params=pltpu.CompilerParams(dimension_semantics=("parallel",)),
        cost_estimate=pl.CostEstimate(
            flops=flops, transcendentals=0, bytes_accessed=bytes_accessed),
    )(xp, w1, w2, b2, w3, b3, w4, b4)

    # Slice + cast fuse into the same jit; only B x 44 values are re-materialized.
    return out[:B, :N_OUT].astype(jnp.float32)


def xavier_uniform(key, fan_in, fan_out, dtype=jnp.float32):
    # Matches torch.nn.init.xavier_uniform_ (gain=1.0); stored as [in, out].
    limit = (6.0 / (fan_in + fan_out)) ** 0.5
    return jax.random.uniform(key, (fan_in, fan_out), dtype, minval=-limit, maxval=limit)


def init_dqn_params(key):
    dims = [(K_IN, H), (H, H), (H, H), (H, N_OUT)]
    keys = jax.random.split(key, len(dims))
    params = []
    for k, (fin, fout) in zip(keys, dims):
        w = xavier_uniform(k, fin, fout)
        b = jnp.full((1, fout), 0.01, dtype=jnp.float32)  # layer.bias.data.fill_(0.01)
        params.append((w, b))
    return params


def dqn_reference(x, params):
    h = x
    for i, (w, b) in enumerate(params):
        h = h @ w + b
        if i < len(params) - 1:
            h = jnp.maximum(h, 0.0)
    return h


if __name__ == "__main__":
    key = jax.random.PRNGKey(0)
    pkey, xkey = jax.random.split(key)
    params = init_dqn_params(pkey)
    packed = pack_params(params)

    # Small demo batch (launch/overhead-bound; real serving should batch >=128 rows).
    B = 8
    x = jax.random.normal(xkey, (B, K_IN), dtype=jnp.float32)

    out = jax.block_until_ready(dqn_forward(x, packed))
    assert out.shape == (B, N_OUT), out.shape

    # Reference with bf16-rounded weights/biases (what the kernel consumes): tight-ish
    # check, plus a looser sanity check against the exact f32 module math.  The kernel
    # also rounds activations and the output to bf16, so these are tolerance checks,
    # not bit comparisons (note for Q-value argmax consumers).
    params_bf16 = [(w.astype(jnp.bfloat16).astype(jnp.float32),
                    b.astype(jnp.bfloat16).astype(jnp.float32)) for (w, b) in params]
    ref_bf16 = dqn_reference(x, params_bf16)
    ref_f32 = dqn_reference(x, params)
    assert jnp.allclose(out, ref_bf16, atol=3e-2, rtol=3e-2), \
        float(jnp.max(jnp.abs(out - ref_bf16)))
    assert jnp.allclose(out, ref_f32, atol=7e-2, rtol=7e-2), \
        float(jnp.max(jnp.abs(out - ref_f32)))

    # Exercise the multi-step batch grid (>= 2 parallel tiles) with a larger batch.
    B2 = 300
    x2 = jax.random.normal(jax.random.PRNGKey(1), (B2, K_IN), dtype=jnp.float32)
    out2 = jax.block_until_ready(dqn_forward(x2, packed, tb_target=128))
    ref2 = dqn_reference(x2, params_bf16)
    assert out2.shape == (B2, N_OUT), out2.shape
    assert jnp.allclose(out2, ref2, atol=3e-2, rtol=3e-2), \
        float(jnp.max(jnp.abs(out2 - ref2)))

    print("KERNEL_OK")
</pallas_src>

<mosaic_0001>
module attributes {stable_mosaic.version = 11 : i64} {
  func.func @dqn_kernel(%arg0: i32, %arg1: memref<16x32xbf16, #tpu.memory_space<vmem>>, %arg2: memref<32x128xbf16, #tpu.memory_space<vmem>>, %arg3: memref<128x128xbf16, #tpu.memory_space<vmem>>, %arg4: memref<1x128xbf16, #tpu.memory_space<vmem>>, %arg5: memref<128x128xbf16, #tpu.memory_space<vmem>>, %arg6: memref<1x128xbf16, #tpu.memory_space<vmem>>, %arg7: memref<128x128xbf16, #tpu.memory_space<vmem>>, %arg8: memref<1x128xbf16, #tpu.memory_space<vmem>>, %arg9: memref<16x128xbf16, #tpu.memory_space<vmem>>) attributes {dimension_semantics = [#tpu.dimension_semantics<parallel>], iteration_bounds = array<i64: 1>, scalar_prefetch = 0 : i64, scratch_operands = 0 : i64, tpu.core_type = #tpu.core_type<tc>, window_params = [{transform_indices = @transform_0, window_bounds = array<i64: 16, 32>}, {pipeline_mode = #tpu.pipeline_mode<synchronous>, transform_indices = @transform_1, window_bounds = array<i64: 32, 128>}, {pipeline_mode = #tpu.pipeline_mode<synchronous>, transform_indices = @transform_2, window_bounds = array<i64: 128, 128>}, {pipeline_mode = #tpu.pipeline_mode<synchronous>, transform_indices = @transform_3, window_bounds = array<i64: 1, 128>}, {pipeline_mode = #tpu.pipeline_mode<synchronous>, transform_indices = @transform_4, window_bounds = array<i64: 128, 128>}, {pipeline_mode = #tpu.pipeline_mode<synchronous>, transform_indices = @transform_5, window_bounds = array<i64: 1, 128>}, {pipeline_mode = #tpu.pipeline_mode<synchronous>, transform_indices = @transform_6, window_bounds = array<i64: 128, 128>}, {pipeline_mode = #tpu.pipeline_mode<synchronous>, transform_indices = @transform_7, window_bounds = array<i64: 1, 128>}, {transform_indices = @transform_8, window_bounds = array<i64: 16, 128>}]} {
    %c0 = arith.constant 0 : index
    %c0_0 = arith.constant 0 : index
    %0 = vector.load %arg1[%c0, %c0_0] : memref<16x32xbf16, #tpu.memory_space<vmem>>, vector<16x32xbf16>
    %c0_1 = arith.constant 0 : index
    %c0_2 = arith.constant 0 : index
    %1 = vector.load %arg2[%c0_1, %c0_2] : memref<32x128xbf16, #tpu.memory_space<vmem>>, vector<32x128xbf16>
    %cst = arith.constant dense<0.000000e+00> : vector<16x128xf32>
    %2 = tpu.matmul %0, %1, %cst {dimension_numbers = #tpu.dot_dimension_numbers<[1], [0], [0], [1], [0, 0, 1, 1], [], []>} : vector<16x32xbf16>, vector<32x128xbf16>, vector<16x128xf32> -> vector<16x128xf32>
    %cst_3 = arith.constant 0.000000e+00 : f32
    %3 = vector.broadcast %cst_3 : f32 to vector<16x128xf32>
    %4 = arith.maximumf %2, %3 : vector<16x128xf32>
    %5 = arith.truncf %4 : vector<16x128xf32> to vector<16x128xbf16>
    %c0_4 = arith.constant 0 : index
    %c0_5 = arith.constant 0 : index
    %6 = vector.load %arg3[%c0_4, %c0_5] : memref<128x128xbf16, #tpu.memory_space<vmem>>, vector<128x128xbf16>
    %cst_6 = arith.constant dense<0.000000e+00> : vector<16x128xf32>
    %7 = tpu.matmul %5, %6, %cst_6 {dimension_numbers = #tpu.dot_dimension_numbers<[1], [0], [0], [1], [0, 0, 1, 1], [], []>} : vector<16x128xbf16>, vector<128x128xbf16>, vector<16x128xf32> -> vector<16x128xf32>
    %8 = arith.truncf %7 : vector<16x128xf32> to vector<16x128xbf16>
    %c0_7 = arith.constant 0 : index
    %c0_8 = arith.constant 0 : index
    %9 = vector.load %arg4[%c0_7, %c0_8] : memref<1x128xbf16, #tpu.memory_space<vmem>>, vector<1x128xbf16>
    %10 = vector.broadcast %9 : vector<1x128xbf16> to vector<16x128xbf16>
    %11 = arith.addf %8, %10 : vector<16x128xbf16>
    %cst_9 = arith.constant 0.000000e+00 : bf16
    %12 = vector.broadcast %cst_9 : bf16 to vector<16x128xbf16>
    %13 = arith.maximumf %11, %12 : vector<16x128xbf16>
    %c0_10 = arith.constant 0 : index
    %c0_11 = arith.constant 0 : index
    %14 = vector.load %arg5[%c0_10, %c0_11] : memref<128x128xbf16, #tpu.memory_space<vmem>>, vector<128x128xbf16>
    %cst_12 = arith.constant dense<0.000000e+00> : vector<16x128xf32>
    %15 = tpu.matmul %13, %14, %cst_12 {dimension_numbers = #tpu.dot_dimension_numbers<[1], [0], [0], [1], [0, 0, 1, 1], [], []>} : vector<16x128xbf16>, vector<128x128xbf16>, vector<16x128xf32> -> vector<16x128xf32>
    %16 = arith.truncf %15 : vector<16x128xf32> to vector<16x128xbf16>
    %c0_13 = arith.constant 0 : index
    %c0_14 = arith.constant 0 : index
    %17 = vector.load %arg6[%c0_13, %c0_14] : memref<1x128xbf16, #tpu.memory_space<vmem>>, vector<1x128xbf16>
    %18 = vector.broadcast %17 : vector<1x128xbf16> to vector<16x128xbf16>
    %19 = arith.addf %16, %18 : vector<16x128xbf16>
    %cst_15 = arith.constant 0.000000e+00 : bf16
    %20 = vector.broadcast %cst_15 : bf16 to vector<16x128xbf16>
    %21 = arith.maximumf %19, %20 : vector<16x128xbf16>
    %c0_16 = arith.constant 0 : index
    %c0_17 = arith.constant 0 : index
    %22 = vector.load %arg7[%c0_16, %c0_17] : memref<128x128xbf16, #tpu.memory_space<vmem>>, vector<128x128xbf16>
    %cst_18 = arith.constant dense<0.000000e+00> : vector<16x128xf32>
    %23 = tpu.matmul %21, %22, %cst_18 {dimension_numbers = #tpu.dot_dimension_numbers<[1], [0], [0], [1], [0, 0, 1, 1], [], []>} : vector<16x128xbf16>, vector<128x128xbf16>, vector<16x128xf32> -> vector<16x128xf32>
    %c0_19 = arith.constant 0 : index
    %c0_20 = arith.constant 0 : index
    %24 = vector.load %arg8[%c0_19, %c0_20] : memref<1x128xbf16, #tpu.memory_space<vmem>>, vector<1x128xbf16>
    %25 = arith.extf %24 : vector<1x128xbf16> to vector<1x128xf32>
    %26 = vector.broadcast %25 : vector<1x128xf32> to vector<16x128xf32>
    %27 = arith.addf %23, %26 : vector<16x128xf32>
    %28 = arith.truncf %27 : vector<16x128xf32> to vector<16x128xbf16>
    %c0_21 = arith.constant 0 : index
    %c0_22 = arith.constant 0 : index
    %29 = vector.load %arg9[%c0_21, %c0_22] : memref<16x128xbf16, #tpu.memory_space<vmem>>, vector<16x128xbf16>
    tpu.vector_store %arg9[%c0_21, %c0_22], %28 {strides = array<i32>} : memref<16x128xbf16, #tpu.memory_space<vmem>>, vector<16x128xbf16>,
    return
  }
  func.func @transform_0(%arg0: i32) -> (i32, i32) {
    %c0_i32 = arith.constant 0 : i32
    %c0_i32_0 = arith.constant 0 : i32
    return %arg0, %c0_i32 : i32, i32
  }
  func.func @transform_1(%arg0: i32) -> (i32, i32) {
    %c0_i32 = arith.constant 0 : i32
    %c0_i32_0 = arith.constant 0 : i32
    %c0_i32_1 = arith.constant 0 : i32
    return %c0_i32, %c0_i32_0 : i32, i32
  }
  func.func @transform_2(%arg0: i32) -> (i32, i32) {
    %c0_i32 = arith.constant 0 : i32
    %c0_i32_0 = arith.constant 0 : i32
    %c0_i32_1 = arith.constant 0 : i32
    return %c0_i32, %c0_i32_0 : i32, i32
  }
  func.func @transform_3(%arg0: i32) -> (i32, i32) {
    %c0_i32 = arith.constant 0 : i32
    %c0_i32_0 = arith.constant 0 : i32
    %c0_i32_1 = arith.constant 0 : i32
    return %c0_i32, %c0_i32_0 : i32, i32
  }
  func.func @transform_4(%arg0: i32) -> (i32, i32) {
    %c0_i32 = arith.constant 0 : i32
    %c0_i32_0 = arith.constant 0 : i32
    %c0_i32_1 = arith.constant 0 : i32
    return %c0_i32, %c0_i32_0 : i32, i32
  }
  func.func @transform_5(%arg0: i32) -> (i32, i32) {
    %c0_i32 = arith.constant 0 : i32
    %c0_i32_0 = arith.constant 0 : i32
    %c0_i32_1 = arith.constant 0 : i32
    return %c0_i32, %c0_i32_0 : i32, i32
  }
  func.func @transform_6(%arg0: i32) -> (i32, i32) {
    %c0_i32 = arith.constant 0 : i32
    %c0_i32_0 = arith.constant 0 : i32
    %c0_i32_1 = arith.constant 0 : i32
    return %c0_i32, %c0_i32_0 : i32, i32
  }
  func.func @transform_7(%arg0: i32) -> (i32, i32) {
    %c0_i32 = arith.constant 0 : i32
    %c0_i32_0 = arith.constant 0 : i32
    %c0_i32_1 = arith.constant 0 : i32
    return %c0_i32, %c0_i32_0 : i32, i32
  }
  func.func @transform_8(%arg0: i32) -> (i32, i32) {
    %c0_i32 = arith.constant 0 : i32
    %c0_i32_0 = arith.constant 0 : i32
    return %arg0, %c0_i32 : i32, i32
  }
}

</mosaic_0001>

<llo_original>
// kernel: dqn_forward.1
$region0: #{dqn_forward.1}
  #allocation0 [shape = 'u32[]', space=smem, size = 0x4, offset = 0x4, fixed_abs, tag = 'smem constant byte address 0x4 - core index']
  #allocation1 [shape = 'u32[144,128]{1,0:T(1,128)}', space=vmem, size = 0x12000, scoped, tag = 'internal scratch']
  %s0 = inlined_call_operand.vmem [shape: bf16[16,32], index: 0, kind: input, shape index: {}]
  %s1 = inlined_call_operand.vmem [shape: bf16[32,128], index: 1, kind: input, shape index: {}]
  %s2 = inlined_call_operand.vmem [shape: bf16[128,128], index: 2, kind: input, shape index: {}]
  %s3 = inlined_call_operand.vmem [shape: bf16[1,128], index: 3, kind: input, shape index: {}]
  %s4 = inlined_call_operand.hbm [shape: bf16[128,128], index: 4, kind: input, shape index: {}]
  %s5 = inlined_call_operand.vmem [shape: bf16[1,128], index: 5, kind: input, shape index: {}]
  %s6 = inlined_call_operand.hbm [shape: bf16[128,128], index: 6, kind: input, shape index: {}]
  %s7 = inlined_call_operand.vmem [shape: bf16[1,128], index: 7, kind: input, shape index: {}]
  %s8 = inlined_call_operand.vmem [shape: bf16[16,128], index: 8, kind: output, shape index: {}]
  %s9 = sld [smem:[#allocation0]]
  $region50: #{dqn_forward.1} parent=0
    _
  %s11 = ssub.s32 1, %s9
  %s12 = scalar_select 0, %s11, %s9
  $region1: #{dqn_forward.1} parent=0
    #allocation2 [shape = 'u8[32768]{0}', space=vmem, size = 0x8000, scoped, tag = 'input window, operand 4, single buffered']
    #allocation3 [shape = 's32[1]{0}', space=sflag, size = 0x4, scoped, tag = 'scoped memory for dqn_forward.1']
    #allocation4 [shape = 'u8[32768]{0}', space=vmem, size = 0x8000, scoped, tag = 'input window, operand 6, single buffered']
    #allocation5 [shape = 's32[1]{0}', space=sflag, size = 0x4, scoped, tag = 'scoped memory for dqn_forward.1']
    %13 = vsyncpa [#allocation3], 0
    %14 = vsyncpa [#allocation5], 0
    // Predicated region
    $region2: #{dqn_forward.1} parent=1 // pred_check
      _
    $region3: #{dqn_forward.1} parent=1 // pred_check_branch
      %16 = sbr.rel (0) target = $region5
    $region4: #{dqn_forward.1} parent=1 // pred_region
      _
    $region5: #{dqn_forward.1} parent=1 // pred_fallthru
      _
    // Predicated region
    $region6: #{dqn_forward.1} parent=1 // pred_check
      _
    $region7: #{dqn_forward.1} parent=1 // pred_check_branch
      %18 = sbr.rel (0) target = $region9
    $region8: #{dqn_forward.1} parent=1 // pred_region
      _
    $region9: #{dqn_forward.1} parent=1 // pred_fallthru
      _
    // Predicated region
    $region10: #{dqn_forward.1} parent=1 // pred_check
      _
    $region11: #{dqn_forward.1} parent=1 // pred_check_branch
      %20 = sbr.rel (0) target = $region13
    $region12: #{dqn_forward.1} parent=1 // pred_region
      _
    $region13: #{dqn_forward.1} parent=1 // pred_fallthru
      _
    // Predicated region
    $region14: #{dqn_forward.1} parent=1 // pred_check
      _
    $region15: #{dqn_forward.1} parent=1 // pred_check_branch
      %22 = sbr.rel (0) target = $region17
    $region16: #{dqn_forward.1} parent=1 // pred_region
      _
    $region17: #{dqn_forward.1} parent=1 // pred_fallthru
      _
    // Predicated region
    $region18: #{dqn_forward.1} parent=1 // pred_check
      _
    $region19: #{dqn_forward.1} parent=1 // pred_check_branch
      %24 = sbr.rel (0) target = $region21
    $region20: #{dqn_forward.1} parent=1 // pred_region
      %s26 = ssub.s32 1024, 1024
      %27 = vsyncadd [#allocation3], %s26
      %s28 = sshll.u32 [#allocation2], 4
      %s29 = int_to_ptr.vmem [resolvable:$true] %s28
      %34 = dma.hbm_to_vmem [thread:$0]  %s4, 1024, %s29, [#allocation3], 64, 64, 4
    $region21: #{dqn_forward.1} parent=1 // pred_fallthru
      _
    // Predicated region
    $region22: #{dqn_forward.1} parent=1 // pred_check
      _
    $region23: #{dqn_forward.1} parent=1 // pred_check_branch
      %36 = sbr.rel (0) target = $region25
    $region24: #{dqn_forward.1} parent=1 // pred_region
      _
    $region25: #{dqn_forward.1} parent=1 // pred_fallthru
      _
    // Predicated region
    $region26: #{dqn_forward.1} parent=1 // pred_check
      _
    $region27: #{dqn_forward.1} parent=1 // pred_check_branch
      %38 = sbr.rel (0) target = $region29
    $region28: #{dqn_forward.1} parent=1 // pred_region
      %s40 = ssub.s32 1024, 1024
      %41 = vsyncadd [#allocation5], %s40
      %s42 = sshll.u32 [#allocation4], 4
      %s43 = int_to_ptr.vmem [resolvable:$true] %s42
      %48 = dma.hbm_to_vmem [thread:$0]  %s6, 1024, %s43, [#allocation5], 64, 64, 4
    $region29: #{dqn_forward.1} parent=1 // pred_fallthru
      _
    // Predicated region
    $region30: #{dqn_forward.1} parent=1 // pred_check
      _
    $region31: #{dqn_forward.1} parent=1 // pred_check_branch
      %50 = sbr.rel (0) target = $region33
    $region32: #{dqn_forward.1} parent=1 // pred_region
      _
    $region33: #{dqn_forward.1} parent=1 // pred_fallthru
      _
    // Predicated region
    $region34: #{dqn_forward.1} parent=1 // pred_check
      _
    $region35: #{dqn_forward.1} parent=1 // pred_check_branch
      %52 = sbr.rel (0) target = $region37
    $region36: #{dqn_forward.1} parent=1 // pred_region
      %53 = dma.done [#allocation3], 1024
    $region37: #{dqn_forward.1} parent=1 // pred_fallthru
      _
    // Predicated region
    $region38: #{dqn_forward.1} parent=1 // pred_check
      _
    $region39: #{dqn_forward.1} parent=1 // pred_check_branch
      %55 = sbr.rel (0) target = $region41
    $region40: #{dqn_forward.1} parent=1 // pred_region
      %56 = dma.done [#allocation5], 1024
    $region41: #{dqn_forward.1} parent=1 // pred_fallthru
      _
    %v58 = vld [vmem:[%s0] sm:$0xf]
    %v59 = vld [vmem:[%s0 + $0x4] sm:$0xf]
    %v60 = vld [vmem:[%s1] sm:$0xf]
    %v61 = vld [vmem:[%s1 + $0x4] sm:$0xf]
    %v62 = vld [vmem:[%s1 + $0x8] sm:$0xf]
    %v63 = vld [vmem:[%s1 + $0xc] sm:$0xf]
    %v66 = vunpack.c.l.b16 %v58
    %v67 = vunpack.c.l.b16 %v59
    %v68 = vpack.c.b16 %v67, %v66
    %v73 = vunpack.c.l.b16 %v60
    %v74 = vunpack.c.l.b16 %v61
    %v75 = vunpack.c.l.b16 %v62
    %v76 = vunpack.c.l.b16 %v63
    %v77 = vpack.c.b16 %v74, %v73
    %v78 = vpack.c.b16 %v76, %v75
    %vm81 = vcmask 261120
    %v83 = vsel %vm81, %v68, 0
    %85 = vmatprep.subr.bf16.mxu0 0
    %86 = vmatpush1.bf16.msra.mxu0 %v77
    %87 = vmatprep.subr.bf16.mxu0 0
    %88 = vmatpush1.bf16.msra.mxu0 %v78
    %89 = vmatprep.subr.bf16.mxu0 0
    %90 = vmatpush1.bf16.msra.mxu0 0
    %91 = vmatprep.subr.bf16.mxu0 0
    %92 = vmatpush1.bf16.msra.mxu0 0
    %93 = vmatprep.subr.bf16.mxu0 0
    %94 = vmatpush1.bf16.msra.mxu0 0
    %95 = vmatprep.subr.bf16.mxu0 0
    %96 = vmatpush1.bf16.msra.mxu0 0
    %97 = vmatprep.subr.bf16.mxu0 0
    %98 = vmatpush1.bf16.msra.mxu0 0
    %99 = vmatprep.subr.bf16.mxu0 0
    %100 = vmatpush1.bf16.msra.mxu0 0
    %101 = vmatprep.subr.bf16.mxu0 0
    %102 = vmatpush1.bf16.msra.mxu0 0
    %103 = vmatprep.subr.bf16.mxu0 0
    %104 = vmatpush1.bf16.msra.mxu0 0
    %105 = vmatprep.subr.bf16.mxu0 0
    %106 = vmatpush1.bf16.msra.mxu0 0
    %107 = vmatprep.subr.bf16.mxu0 0
    %108 = vmatpush1.bf16.msra.mxu0 0
    %109 = vmatprep.subr.bf16.mxu0 0
    %110 = vmatpush1.bf16.msra.mxu0 0
    %111 = vmatprep.subr.bf16.mxu0 0
    %112 = vmatpush1.bf16.msra.mxu0 0
    %113 = vmatprep.subr.bf16.mxu0 0
    %114 = vmatpush1.bf16.msra.mxu0 0
    %115 = vmatprep.subr.bf16.mxu0 0
    %116 = vmatpush1.bf16.msra.mxu0 0
    %117 = vmatprep.mubr.bf16.mxu0 0
    %118 = vmatmul.mubr.bf16.gmra.mrb[0].mxu0 %v83
    %v119 = vpop.f32.mrb[0].mxu0
    %v120 = vadd.f32 0.0, %v119
    %v121 = vpop.f32.mrb[0].mxu0
    %v122 = vpop.f32.mrb[0].mxu0
    %v123 = vadd.f32 0.0, %v122
    %v124 = vpop.f32.mrb[0].mxu0
    %125 = vdwg.mxu0
    %v126 = vmax.f32 %v120, 0.0
    %v127 = vmax.f32 %v123, 0.0
    %v128 = vpack.c.bf16 %v127, %v126
    %v129 = vld [vmem:[%s2] sm:$0xf]
    %v130 = vld [vmem:[%s2 + $0x4] sm:$0xf]
    %v131 = vld [vmem:[%s2 + $0x8] sm:$0xf]
    %v132 = vld [vmem:[%s2 + $0xc] sm:$0xf]
    %v133 = vld [vmem:[%s2 + $0x10] sm:$0xf]
    %v134 = vld [vmem:[%s2 + $0x14] sm:$0xf]
    %v135 = vld [vmem:[%s2 + $0x18] sm:$0xf]
    %v136 = vld [vmem:[%s2 + $0x1c] sm:$0xf]
    %v137 = vld [vmem:[%s2 + $0x20] sm:$0xf]
    %v138 = vld [vmem:[%s2 + $0x24] sm:$0xf]
    %v139 = vld [vmem:[%s2 + $0x28] sm:$0xf]
    %v140 = vld [vmem:[%s2 + $0x2c] sm:$0xf]
    %v141 = vld [vmem:[%s2 + $0x30] sm:$0xf]
    %v142 = vld [vmem:[%s2 + $0x34] sm:$0xf]
    %v143 = vld [vmem:[%s2 + $0x38] sm:$0xf]
    %v144 = vld [vmem:[%s2 + $0x3c] sm:$0xf]
    %v161 = vunpack.c.l.b16 %v129
    %v162 = vunpack.c.l.b16 %v130
    %v163 = vunpack.c.l.b16 %v131
    %v164 = vunpack.c.l.b16 %v132
    %v165 = vunpack.c.l.b16 %v133
    %v166 = vunpack.c.l.b16 %v134
    %v167 = vunpack.c.l.b16 %v135
    %v168 = vunpack.c.l.b16 %v136
    %v169 = vunpack.c.l.b16 %v137
    %v170 = vunpack.c.l.b16 %v138
    %v171 = vunpack.c.l.b16 %v139
    %v172 = vunpack.c.l.b16 %v140
    %v173 = vunpack.c.l.b16 %v141
    %v174 = vunpack.c.l.b16 %v142
    %v175 = vunpack.c.l.b16 %v143
    %v176 = vunpack.c.l.b16 %v144
    %v177 = vpack.c.b16 %v162, %v161
    %v178 = vpack.c.b16 %v164, %v163
    %v179 = vpack.c.b16 %v166, %v165
    %v180 = vpack.c.b16 %v168, %v167
    %v181 = vpack.c.b16 %v170, %v169
    %v182 = vpack.c.b16 %v172, %v171
    %v183 = vpack.c.b16 %v174, %v173
    %v184 = vpack.c.b16 %v176, %v175
    %193 = vmatprep.subr.bf16.mxu0 0
    %194 = vmatpush1.bf16.msra.mxu0 %v177
    %195 = vmatprep.subr.bf16.mxu0 0
    %196 = vmatpush1.bf16.msra.mxu0 %v178
    %197 = vmatprep.subr.bf16.mxu0 0
    %198 = vmatpush1.bf16.msra.mxu0 %v179
    %199 = vmatprep.subr.bf16.mxu0 0
    %200 = vmatpush1.bf16.msra.mxu0 %v180
    %201 = vmatprep.subr.bf16.mxu0 0
    %202 = vmatpush1.bf16.msra.mxu0 %v181
    %203 = vmatprep.subr.bf16.mxu0 0
    %204 = vmatpush1.bf16.msra.mxu0 %v182
    %205 = vmatprep.subr.bf16.mxu0 0
    %206 = vmatpush1.bf16.msra.mxu0 %v183
    %207 = vmatprep.subr.bf16.mxu0 0
    %208 = vmatpush1.bf16.msra.mxu0 %v184
    %209 = vmatprep.subr.bf16.mxu0 0
    %210 = vmatpush1.bf16.msra.mxu0 0
    %211 = vmatprep.subr.bf16.mxu0 0
    %212 = vmatpush1.bf16.msra.mxu0 0
    %213 = vmatprep.subr.bf16.mxu0 0
    %214 = vmatpush1.bf16.msra.mxu0 0
    %215 = vmatprep.subr.bf16.mxu0 0
    %216 = vmatpush1.bf16.msra.mxu0 0
    %217 = vmatprep.subr.bf16.mxu0 0
    %218 = vmatpush1.bf16.msra.mxu0 0
    %219 = vmatprep.subr.bf16.mxu0 0
    %220 = vmatpush1.bf16.msra.mxu0 0
    %221 = vmatprep.subr.bf16.mxu0 0
    %222 = vmatpush1.bf16.msra.mxu0 0
    %223 = vmatprep.subr.bf16.mxu0 0
    %224 = vmatpush1.bf16.msra.mxu0 0
    %225 = vmatprep.mubr.bf16.mxu0 0
    %226 = vmatmul.mubr.bf16.gmra.mrb[0].mxu0 %v128
    %v227 = vpop.f32.mrb[0].mxu0
    %v228 = vadd.f32 0.0, %v227
    %v229 = vpop.f32.mrb[0].mxu0
    %v230 = vpop.f32.mrb[0].mxu0
    %v231 = vadd.f32 0.0, %v230
    %v232 = vpop.f32.mrb[0].mxu0
    %233 = vdwg.mxu0
    %v234 = vpack.c.bf16 %v231, %v228
    %v235 = vld [vmem:[%s3] sm:$0x1]
    %v237 = vpack.i.b16 %v235, %v235
    %v239 = vlaneseq
    %v240 = vshrl.u32 %v239, 7
    %v241 = vsub.s32 0, %v240
    %v242 = vrot.slane %v237, %v241
    %v243 = vadd.bf16 %v234, %v242
    %v244 = vmax.bf16 %v243, 0
    %v245 = vld [vmem:[#allocation2] sm:$0xf]
    %v246 = vld [vmem:[#allocation2 + $0x4] sm:$0xf]
    %v247 = vld [vmem:[#allocation2 + $0x8] sm:$0xf]
    %v248 = vld [vmem:[#allocation2 + $0xc] sm:$0xf]
    %v249 = vld [vmem:[#allocation2 + $0x10] sm:$0xf]
    %v250 = vld [vmem:[#allocation2 + $0x14] sm:$0xf]
    %v251 = vld [vmem:[#allocation2 + $0x18] sm:$0xf]
    %v252 = vld [vmem:[#allocation2 + $0x1c] sm:$0xf]
    %v253 = vld [vmem:[#allocation2 + $0x20] sm:$0xf]
    %v254 = vld [vmem:[#allocation2 + $0x24] sm:$0xf]
    %v255 = vld [vmem:[#allocation2 + $0x28] sm:$0xf]
    %v256 = vld [vmem:[#allocation2 + $0x2c] sm:$0xf]
    %v257 = vld [vmem:[#allocation2 + $0x30] sm:$0xf]
    %v258 = vld [vmem:[#allocation2 + $0x34] sm:$0xf]
    %v259 = vld [vmem:[#allocation2 + $0x38] sm:$0xf]
    %v260 = vld [vmem:[#allocation2 + $0x3c] sm:$0xf]
    %v277 = vunpack.c.l.b16 %v245
    %v278 = vunpack.c.l.b16 %v246
    %v279 = vunpack.c.l.b16 %v247
    %v280 = vunpack.c.l.b16 %v248
    %v281 = vunpack.c.l.b16 %v249
    %v282 = vunpack.c.l.b16 %v250
    %v283 = vunpack.c.l.b16 %v251
    %v284 = vunpack.c.l.b16 %v252
    %v285 = vunpack.c.l.b16 %v253
    %v286 = vunpack.c.l.b16 %v254
    %v287 = vunpack.c.l.b16 %v255
    %v288 = vunpack.c.l.b16 %v256
    %v289 = vunpack.c.l.b16 %v257
    %v290 = vunpack.c.l.b16 %v258
    %v291 = vunpack.c.l.b16 %v259
    %v292 = vunpack.c.l.b16 %v260
    %v293 = vpack.c.b16 %v278, %v277
    %v294 = vpack.c.b16 %v280, %v279
    %v295 = vpack.c.b16 %v282, %v281
    %v296 = vpack.c.b16 %v284, %v283
    %v297 = vpack.c.b16 %v286, %v285
    %v298 = vpack.c.b16 %v288, %v287
    %v299 = vpack.c.b16 %v290, %v289
    %v300 = vpack.c.b16 %v292, %v291
    %309 = vmatprep.subr.bf16.mxu0 0
    %310 = vmatpush1.bf16.msra.mxu0 %v293
    %311 = vmatprep.subr.bf16.mxu0 0
    %312 = vmatpush1.bf16.msra.mxu0 %v294
    %313 = vmatprep.subr.bf16.mxu0 0
    %314 = vmatpush1.bf16.msra.mxu0 %v295
    %315 = vmatprep.subr.bf16.mxu0 0
    %316 = vmatpush1.bf16.msra.mxu0 %v296
    %317 = vmatprep.subr.bf16.mxu0 0
    %318 = vmatpush1.bf16.msra.mxu0 %v297
    %319 = vmatprep.subr.bf16.mxu0 0
    %320 = vmatpush1.bf16.msra.mxu0 %v298
    %321 = vmatprep.subr.bf16.mxu0 0
    %322 = vmatpush1.bf16.msra.mxu0 %v299
    %323 = vmatprep.subr.bf16.mxu0 0
    %324 = vmatpush1.bf16.msra.mxu0 %v300
    %325 = vmatprep.subr.bf16.mxu0 0
    %326 = vmatpush1.bf16.msra.mxu0 0
    %327 = vmatprep.subr.bf16.mxu0 0
    %328 = vmatpush1.bf16.msra.mxu0 0
    %329 = vmatprep.subr.bf16.mxu0 0
    %330 = vmatpush1.bf16.msra.mxu0 0
    %331 = vmatprep.subr.bf16.mxu0 0
    %332 = vmatpush1.bf16.msra.mxu0 0
    %333 = vmatprep.subr.bf16.mxu0 0
    %334 = vmatpush1.bf16.msra.mxu0 0
    %335 = vmatprep.subr.bf16.mxu0 0
    %336 = vmatpush1.bf16.msra.mxu0 0
    %337 = vmatprep.subr.bf16.mxu0 0
    %338 = vmatpush1.bf16.msra.mxu0 0
    %339 = vmatprep.subr.bf16.mxu0 0
    %340 = vmatpush1.bf16.msra.mxu0 0
    %341 = vmatprep.mubr.bf16.mxu0 0
    %342 = vmatmul.mubr.bf16.gmra.mrb[0].mxu0 %v244
    %v343 = vpop.f32.mrb[0].mxu0
    %v344 = vadd.f32 0.0, %v343
    %v345 = vpop.f32.mrb[0].mxu0
    %v346 = vpop.f32.mrb[0].mxu0
    %v347 = vadd.f32 0.0, %v346
    %v348 = vpop.f32.mrb[0].mxu0
    %349 = vdwg.mxu0
    %v350 = vpack.c.bf16 %v347, %v344
    %v351 = vld [vmem:[%s5] sm:$0x1]
    %v353 = vpack.i.b16 %v351, %v351
    %v355 = vlaneseq
    %v356 = vshrl.u32 %v355, 7
    %v357 = vsub.s32 0, %v356
    %v358 = vrot.slane %v353, %v357
    %v359 = vadd.bf16 %v350, %v358
    %v360 = vmax.bf16 %v359, 0
    %v361 = vld [vmem:[#allocation4] sm:$0xf]
    %v362 = vld [vmem:[#allocation4 + $0x4] sm:$0xf]
    %v363 = vld [vmem:[#allocation4 + $0x8] sm:$0xf]
    %v364 = vld [vmem:[#allocation4 + $0xc] sm:$0xf]
    %v365 = vld [vmem:[#allocation4 + $0x10] sm:$0xf]
    %v366 = vld [vmem:[#allocation4 + $0x14] sm:$0xf]
    %v367 = vld [vmem:[#allocation4 + $0x18] sm:$0xf]
    %v368 = vld [vmem:[#allocation4 + $0x1c] sm:$0xf]
    %v369 = vld [vmem:[#allocation4 + $0x20] sm:$0xf]
    %v370 = vld [vmem:[#allocation4 + $0x24] sm:$0xf]
    %v371 = vld [vmem:[#allocation4 + $0x28] sm:$0xf]
    %v372 = vld [vmem:[#allocation4 + $0x2c] sm:$0xf]
    %v373 = vld [vmem:[#allocation4 + $0x30] sm:$0xf]
    %v374 = vld [vmem:[#allocation4 + $0x34] sm:$0xf]
    %v375 = vld [vmem:[#allocation4 + $0x38] sm:$0xf]
    %v376 = vld [vmem:[#allocation4 + $0x3c] sm:$0xf]
    %v377 = vld [vmem:[%s7] sm:$0x1]
    %v378 = vunpack.c.l.bf16 %v377
    %v379 = vlaneseq
    %v380 = vshrl.u32 %v379, 7
    %v381 = vsub.s32 0, %v380
    %v382 = vrot.slane %v378, %v381
    %v399 = vunpack.c.l.b16 %v361
    %v400 = vunpack.c.l.b16 %v362
    %v401 = vunpack.c.l.b16 %v363
    %v402 = vunpack.c.l.b16 %v364
    %v403 = vunpack.c.l.b16 %v365
    %v404 = vunpack.c.l.b16 %v366
    %v405 = vunpack.c.l.b16 %v367
    %v406 = vunpack.c.l.b16 %v368
    %v407 = vunpack.c.l.b16 %v369
    %v408 = vunpack.c.l.b16 %v370
    %v409 = vunpack.c.l.b16 %v371
    %v410 = vunpack.c.l.b16 %v372
    %v411 = vunpack.c.l.b16 %v373
    %v412 = vunpack.c.l.b16 %v374
    %v413 = vunpack.c.l.b16 %v375
    %v414 = vunpack.c.l.b16 %v376
    %v415 = vpack.c.b16 %v400, %v399
    %v416 = vpack.c.b16 %v402, %v401
    %v417 = vpack.c.b16 %v404, %v403
    %v418 = vpack.c.b16 %v406, %v405
    %v419 = vpack.c.b16 %v408, %v407
    %v420 = vpack.c.b16 %v410, %v409
    %v421 = vpack.c.b16 %v412, %v411
    %v422 = vpack.c.b16 %v414, %v413
    %431 = vmatprep.subr.bf16.mxu0 0
    %432 = vmatpush1.bf16.msra.mxu0 %v415
    %433 = vmatprep.subr.bf16.mxu0 0
    %434 = vmatpush1.bf16.msra.mxu0 %v416
    %435 = vmatprep.subr.bf16.mxu0 0
    %436 = vmatpush1.bf16.msra.mxu0 %v417
    %437 = vmatprep.subr.bf16.mxu0 0
    %438 = vmatpush1.bf16.msra.mxu0 %v418
    %439 = vmatprep.subr.bf16.mxu0 0
    %440 = vmatpush1.bf16.msra.mxu0 %v419
    %441 = vmatprep.subr.bf16.mxu0 0
    %442 = vmatpush1.bf16.msra.mxu0 %v420
    %443 = vmatprep.subr.bf16.mxu0 0
    %444 = vmatpush1.bf16.msra.mxu0 %v421
    %445 = vmatprep.subr.bf16.mxu0 0
    %446 = vmatpush1.bf16.msra.mxu0 %v422
    %447 = vmatprep.subr.bf16.mxu0 0
    %448 = vmatpush1.bf16.msra.mxu0 0
    %449 = vmatprep.subr.bf16.mxu0 0
    %450 = vmatpush1.bf16.msra.mxu0 0
    %451 = vmatprep.subr.bf16.mxu0 0
    %452 = vmatpush1.bf16.msra.mxu0 0
    %453 = vmatprep.subr.bf16.mxu0 0
    %454 = vmatpush1.bf16.msra.mxu0 0
    %455 = vmatprep.subr.bf16.mxu0 0
    %456 = vmatpush1.bf16.msra.mxu0 0
    %457 = vmatprep.subr.bf16.mxu0 0
    %458 = vmatpush1.bf16.msra.mxu0 0
    %459 = vmatprep.subr.bf16.mxu0 0
    %460 = vmatpush1.bf16.msra.mxu0 0
    %461 = vmatprep.subr.bf16.mxu0 0
    %462 = vmatpush1.bf16.msra.mxu0 0
    %463 = vmatprep.mubr.bf16.mxu0 0
    %464 = vmatmul.mubr.bf16.gmra.mrb[0].mxu0 %v360
    %v465 = vpop.f32.mrb[0].mxu0
    %v466 = vadd.f32 %v382, %v465
    %v467 = vpop.f32.mrb[0].mxu0
    %v468 = vpop.f32.mrb[0].mxu0
    %v469 = vadd.f32 %v382, %v468
    %v470 = vpop.f32.mrb[0].mxu0
    %471 = vdwg.mxu0
    %v472 = vpack.c.bf16 %v469, %v466
    %v474 = vunpack.c.l.b16 %v472
    %v475 = vunpack.c.h.b16 %v472
    %v476 = vpack.c.b16 %v474, %v474
    %v477 = vpack.c.b16 %v475, %v475
    %480 = vst [vmem:[%s8] sm:$0xf] %v476
    %481 = vst [vmem:[%s8 + $0x4] sm:$0xf] %v477
    // Predicated region
    $region42: #{dqn_forward.1} parent=1 // pred_check
      _
    $region43: #{dqn_forward.1} parent=1 // pred_check_branch
      %483 = sbr.rel (0) target = $region45
    $region44: #{dqn_forward.1} parent=1 // pred_region
      _
    $region45: #{dqn_forward.1} parent=1 // pred_fallthru
      _
    // Predicated region
    $region46: #{dqn_forward.1} parent=1 // pred_check
      _
    $region47: #{dqn_forward.1} parent=1 // pred_check_branch
      %485 = sbr.rel (0) target = $region49
    $region48: #{dqn_forward.1} parent=1 // pred_region
      _
    $region49: #{dqn_forward.1} parent=1 // pred_fallthru
      _
    %486 = vsyncpa [#allocation3], 1
    %487 = vsyncpa [#allocation5], 1

</llo_original>
